<compile_context>
chip_gen: v5e
topology: v5e:2x2
jax: 0.10.0
libtpu: 0.0.40
codegen_flags: <defaults>
</compile_context>

<pallas_src>
import jax
import jax.numpy as jnp
from jax.experimental import pallas as pl
from jax.experimental.pallas import tpu as pltpu


# ----------------------------- Pallas kernel --------------------------------

def _tlu_kernel(x_ref, tau_ref, o_ref):
    # x_ref: (TR, HW) tile, tau_ref: (TR, 1) per-row threshold.
    # (TR, 1) broadcasts across the lane axis -> pure VPU max, no relayout.
    o_ref[...] = jnp.maximum(x_ref[...], tau_ref[...])


# --------------------------- pallas_call wrapper ----------------------------

def tlu_pallas(x_nchw, tau):
    """TLU forward: max(x, tau) with tau shaped (1, C, 1, 1), x NCHW."""
    N, C, H, W = x_nchw.shape
    R, HW = N * C, H * W

    # Free view: NCHW row-major -> one row per (n, c), H*W on the lane axis.
    xf = x_nchw.reshape(R, HW)
    # One threshold scalar per (n, c) row (tiny: R * itemsize bytes).
    tau_rows = (jnp.broadcast_to(jnp.reshape(tau, (1, C)), (N, C))
                .reshape(R, 1).astype(x_nchw.dtype))

    # Row tile: ~1 MiB of x per block, multiple of 8 sublanes, capped at R.
    itemsize = jnp.dtype(x_nchw.dtype).itemsize
    target_rows = max(1, (1 << 20) // max(1, HW * itemsize))
    if target_rows >= R:
        tr = R
    else:
        tr = max(8, (target_rows // 8) * 8)

    out = pl.pallas_call(
        _tlu_kernel,
        out_shape=jax.ShapeDtypeStruct((R, HW), x_nchw.dtype),
        grid=(pl.cdiv(R, tr),),
        in_specs=[pl.BlockSpec((tr, HW), lambda i: (i, 0)),
                  pl.BlockSpec((tr, 1), lambda i: (i, 0))],
        out_specs=pl.BlockSpec((tr, HW), lambda i: (i, 0)),
        compiler_params=pltpu.CompilerParams(
            dimension_semantics=("parallel",)),
    )(xf, tau_rows)
    return out.reshape(N, C, H, W)


# ------------------------------ reference -----------------------------------

def tlu_ref(x_nchw, tau):
    return jnp.maximum(x_nchw, tau)


# ----------------------------------- main ------------------------------------

if __name__ == "__main__":
    key = jax.random.PRNGKey(0)
    kx, kt = jax.random.split(key)

    N, C, H, W = 2, 4, 16, 16
    x = jax.random.normal(kx, (N, C, H, W), jnp.float32)
    # PyTorch reset_parameters() initializes tau to -1; perturb it slightly so
    # the per-channel broadcast is actually exercised.
    tau = (jnp.full((1, C, 1, 1), -1.0, jnp.float32)
           + 0.1 * jax.random.normal(kt, (1, C, 1, 1), jnp.float32))

    y = jax.jit(tlu_pallas)(x, tau)
    y = jax.block_until_ready(y)

    y_ref = tlu_ref(x, tau)
    assert y.shape == (N, C, H, W), y.shape
    max_err = float(jnp.max(jnp.abs(y - y_ref)))
    assert bool(jnp.array_equal(y, y_ref)), f"max err {max_err}"

    print("KERNEL_OK")
</pallas_src>

<mosaic_0001>
module attributes {stable_mosaic.version = 11 : i64} {
  func.func @_tlu_kernel(%arg0: i32, %arg1: memref<8x256xf32, #tpu.memory_space<vmem>>, %arg2: memref<8x1xf32, #tpu.memory_space<vmem>>, %arg3: memref<8x256xf32, #tpu.memory_space<vmem>>) attributes {dimension_semantics = [#tpu.dimension_semantics<parallel>], iteration_bounds = array<i64: 1>, scalar_prefetch = 0 : i64, scratch_operands = 0 : i64, tpu.core_type = #tpu.core_type<tc>, window_params = [{transform_indices = @transform_0, window_bounds = array<i64: 8, 256>}, {transform_indices = @transform_1, window_bounds = array<i64: 8, 1>}, {transform_indices = @transform_2, window_bounds = array<i64: 8, 256>}]} {
    %c0 = arith.constant 0 : index
    %c0_0 = arith.constant 0 : index
    %0 = vector.load %arg1[%c0, %c0_0] : memref<8x256xf32, #tpu.memory_space<vmem>>, vector<8x256xf32>
    %c0_1 = arith.constant 0 : index
    %c0_2 = arith.constant 0 : index
    %1 = vector.load %arg2[%c0_1, %c0_2] : memref<8x1xf32, #tpu.memory_space<vmem>>, vector<8x1xf32>
    %2 = vector.broadcast %1 : vector<8x1xf32> to vector<8x256xf32>
    %3 = arith.maximumf %0, %2 : vector<8x256xf32>
    %c0_3 = arith.constant 0 : index
    %c0_4 = arith.constant 0 : index
    %4 = vector.load %arg3[%c0_3, %c0_4] : memref<8x256xf32, #tpu.memory_space<vmem>>, vector<8x256xf32>
    tpu.vector_store %arg3[%c0_3, %c0_4], %3 {strides = array<i32>} : memref<8x256xf32, #tpu.memory_space<vmem>>, vector<8x256xf32>,
    return
  }
  func.func @transform_0(%arg0: i32) -> (i32, i32) {
    %c0_i32 = arith.constant 0 : i32
    %c0_i32_0 = arith.constant 0 : i32
    return %arg0, %c0_i32 : i32, i32
  }
  func.func @transform_1(%arg0: i32) -> (i32, i32) {
    %c0_i32 = arith.constant 0 : i32
    %c0_i32_0 = arith.constant 0 : i32
    return %arg0, %c0_i32 : i32, i32
  }
  func.func @transform_2(%arg0: i32) -> (i32, i32) {
    %c0_i32 = arith.constant 0 : i32
    %c0_i32_0 = arith.constant 0 : i32
    return %arg0, %c0_i32 : i32, i32
  }
}

</mosaic_0001>

<llo_original>
// kernel: tlu_pallas.1
$region0: #{tlu_pallas.1}
  #allocation0 [shape = 'u32[]', space=smem, size = 0x4, offset = 0x4, fixed_abs, tag = 'smem constant byte address 0x4 - core index']
  #allocation1 [shape = 'u32[72,128]{1,0:T(1,128)}', space=vmem, size = 0x9000, scoped, tag = 'internal scratch']
  %s0 = inlined_call_operand.vmem [shape: f32[8,256], index: 0, kind: input, shape index: {}]
  %s1 = inlined_call_operand.vmem [shape: f32[8,1], index: 1, kind: input, shape index: {}]
  %s2 = inlined_call_operand.vmem [shape: f32[8,256], index: 2, kind: output, shape index: {}]
  %s3 = sld [smem:[#allocation0]]
  $region18: #{tlu_pallas.1} parent=0
    _
  %s5 = ssub.s32 1, %s3
  %s6 = scalar_select 0, %s5, %s3
  // Predicated region
  $region2: #{tlu_pallas.1} parent=0 // pred_check
    _
  $region3: #{tlu_pallas.1} parent=0 // pred_check_branch
    %8 = sbr.rel (0) target = $region5
  $region4: #{tlu_pallas.1} parent=0 // pred_region
    _
  $region5: #{tlu_pallas.1} parent=0 // pred_fallthru
    _
  // Predicated region
  $region6: #{tlu_pallas.1} parent=0 // pred_check
    _
  $region7: #{tlu_pallas.1} parent=0 // pred_check_branch
    %10 = sbr.rel (0) target = $region9
  $region8: #{tlu_pallas.1} parent=0 // pred_region
    _
  $region9: #{tlu_pallas.1} parent=0 // pred_fallthru
    _
  %v11 = vld [vmem:[%s0] sm:$0xff]
  %v12 = vld [vmem:[%s0 + $0x8] sm:$0xff]
  %v13 = vld [vmem:[%s1] sm:$0xff]
  %15 = vset.pattern.permute.xlu0 0
  %16 = vperm.xlu0 %15, %v13
  %v17 = vpop.permute.xlu0 %16
  %v19 = vmax.f32 %v11, %v17
  %v20 = vmax.f32 %v12, %v17
  %21 = vst [vmem:[%s2] sm:$0xff] %v19
  %22 = vst [vmem:[%s2 + $0x8] sm:$0xff] %v20
  // Predicated region
  $region10: #{tlu_pallas.1} parent=0 // pred_check
    _
  $region11: #{tlu_pallas.1} parent=0 // pred_check_branch
    %24 = sbr.rel (0) target = $region13
  $region12: #{tlu_pallas.1} parent=0 // pred_region
    _
  $region13: #{tlu_pallas.1} parent=0 // pred_fallthru
    _
  // Predicated region
  $region14: #{tlu_pallas.1} parent=0 // pred_check
    _
  $region15: #{tlu_pallas.1} parent=0 // pred_check_branch
    %26 = sbr.rel (0) target = $region17
  $region16: #{tlu_pallas.1} parent=0 // pred_region
    _
  $region17: #{tlu_pallas.1} parent=0 // pred_fallthru
    _

</llo_original>
